<compile_context>
chip_gen: v6e
topology: v6e:2x2x1
jax: 0.10.0
libtpu: 0.0.40
codegen_flags: <defaults>
</compile_context>

<pallas_src>
import math

import jax
import jax.numpy as jnp
from jax.experimental import pallas as pl
from jax.experimental.pallas import tpu as pltpu


def _round_up(x, m):
    return ((x + m - 1) // m) * m


def soft_q_kernel(s_ref, a_ref, w1s_ref, w1a_ref, b1_ref, w2_ref, b2_ref,
                  w3_ref, b3_ref, o_ref):
    # Layer 1: two MXU matmuls into the same f32 accumulator replace the
    # concat([state, action]) @ W1 of the PyTorch module.
    h1 = jnp.dot(s_ref[...], w1s_ref[...], preferred_element_type=jnp.float32)
    h1 = h1 + jnp.dot(a_ref[...], w1a_ref[...],
                      preferred_element_type=jnp.float32)
    h1 = jnp.maximum(h1 + b1_ref[...], 0.0)

    # Layer 2: MXU matmul + bias + ReLU.
    h2 = jnp.dot(h1, w2_ref[...], preferred_element_type=jnp.float32)
    h2 = jnp.maximum(h2 + b2_ref[...], 0.0)

    # Layer 3 (hidden -> 1): VPU multiply + XLU lane reduction instead of a
    # 1-output-column MXU matmul. w3_ref is the (1, hidden) weight row.
    q = jnp.sum(h2 * w3_ref[...], axis=-1, keepdims=True) + b3_ref[...]
    o_ref[...] = q.astype(o_ref.dtype)


def soft_q_forward(state, action, params, *, tile_b=None):
    """Pallas forward. state: (B, num_inputs), action: (B, num_actions).

    Returns q of shape (B, 1), matching the PyTorch module.
    """
    B, num_inputs = state.shape
    _, num_actions = action.shape
    hidden = params["w2"].shape[0]

    # Large batch tiles amortize the ~0.35 us/step pipeline overhead; cap at
    # 1024 rows (working set stays well under VMEM on every generation, incl.
    # v7x's 64 MiB).
    if tile_b is None:
        tile_b = min(1024, _round_up(max(B, 1), 8))
    tile_b = _round_up(tile_b, 8)

    # Pad batch so the grid covers it exactly; padded rows are sliced off.
    B_pad = _round_up(B, tile_b)
    if B_pad != B:
        pad = B_pad - B
        state = jnp.pad(state, ((0, pad), (0, 0)))
        action = jnp.pad(action, ((0, pad), (0, 0)))
    num_tiles = pl.cdiv(B_pad, tile_b)

    # Streamed (batch-tiled) inputs.
    s_spec = pl.BlockSpec((tile_b, num_inputs), lambda i: (i, 0))
    a_spec = pl.BlockSpec((tile_b, num_actions), lambda i: (i, 0))
    # VMEM-resident parameters: constant block index -> fetched once.
    w1s_spec = pl.BlockSpec((num_inputs, hidden), lambda i: (0, 0))
    w1a_spec = pl.BlockSpec((num_actions, hidden), lambda i: (0, 0))
    b1_spec = pl.BlockSpec((1, hidden), lambda i: (0, 0))
    w2_spec = pl.BlockSpec((hidden, hidden), lambda i: (0, 0))
    b2_spec = pl.BlockSpec((1, hidden), lambda i: (0, 0))
    w3_spec = pl.BlockSpec((1, hidden), lambda i: (0, 0))
    b3_spec = pl.BlockSpec((1, 1), lambda i: (0, 0))
    out_spec = pl.BlockSpec((tile_b, 1), lambda i: (i, 0))

    grid_spec = pltpu.PrefetchScalarGridSpec(
        num_scalar_prefetch=0,
        grid=(num_tiles,),
        in_specs=[s_spec, a_spec, w1s_spec, w1a_spec, b1_spec,
                  w2_spec, b2_spec, w3_spec, b3_spec],
        out_specs=out_spec,
    )

    out = pl.pallas_call(
        soft_q_kernel,
        out_shape=jax.ShapeDtypeStruct((B_pad, 1), jnp.float32),
        grid_spec=grid_spec,
        compiler_params=pltpu.CompilerParams(
            dimension_semantics=("parallel",)),
    )(state, action, params["w1s"], params["w1a"], params["b1"],
      params["w2"], params["b2"], params["w3_row"], params["b3"])

    return out[:B]


def init_params(key, num_inputs, num_actions, hidden_size, init_w=0.003):
    """Deterministic init matching PyTorch nn.Linear defaults + SoftQNetwork's
    uniform(-init_w, init_w) override of linear3. W1 is split into state /
    action halves so the kernel never needs the concatenated input."""
    in_dim = num_inputs + num_actions
    k1, k2, k3, k4, k5, k6 = jax.random.split(key, 6)

    def linear_init(kw, kb, fan_in, fan_out):
        bound = 1.0 / math.sqrt(fan_in)
        w = jax.random.uniform(kw, (fan_in, fan_out), jnp.float32, -bound, bound)
        b = jax.random.uniform(kb, (1, fan_out), jnp.float32, -bound, bound)
        return w, b

    w1, b1 = linear_init(k1, k2, in_dim, hidden_size)
    w2, b2 = linear_init(k3, k4, hidden_size, hidden_size)
    w3 = jax.random.uniform(k5, (hidden_size, 1), jnp.float32, -init_w, init_w)
    b3 = jax.random.uniform(k6, (1, 1), jnp.float32, -init_w, init_w)

    return {
        # kernel parameters
        "w1s": w1[:num_inputs], "w1a": w1[num_inputs:], "b1": b1,
        "w2": w2, "b2": b2,
        "w3_row": jnp.transpose(w3), "b3": b3,
        # unsplit copies kept only for the pure-JAX reference check
        "w1": w1, "w3": w3,
    }


if __name__ == "__main__":
    # Small shapes consistent with the module's forward.
    batch = 2
    num_inputs = 24     # state dim
    num_actions = 8     # action dim
    hidden_size = 32

    key = jax.random.PRNGKey(0)
    k_state, k_action, k_params = jax.random.split(key, 3)

    state = jax.random.normal(k_state, (batch, num_inputs), jnp.float32)
    action = jax.random.normal(k_action, (batch, num_actions), jnp.float32)
    params = init_params(k_params, num_inputs, num_actions, hidden_size)

    q = soft_q_forward(state, action, params)
    jax.block_until_ready(q)

    # Pure-JAX reference (same math as the PyTorch module, outside Pallas).
    x = jnp.concatenate([state, action], axis=1)
    h1 = jnp.maximum(x @ params["w1"] + params["b1"], 0.0)
    h2 = jnp.maximum(h1 @ params["w2"] + params["b2"], 0.0)
    q_ref = h2 @ params["w3"] + params["b3"]

    assert q.shape == (batch, 1)
    assert jnp.allclose(q, q_ref, atol=1e-5, rtol=1e-5)

    print("KERNEL_OK")
</pallas_src>

<mosaic_0001>
module attributes {stable_mosaic.version = 11 : i64} {
  func.func @soft_q_kernel(%arg0: i32, %arg1: memref<8x24xf32, #tpu.memory_space<vmem>>, %arg2: memref<8x8xf32, #tpu.memory_space<vmem>>, %arg3: memref<24x32xf32, #tpu.memory_space<vmem>>, %arg4: memref<8x32xf32, #tpu.memory_space<vmem>>, %arg5: memref<1x32xf32, #tpu.memory_space<vmem>>, %arg6: memref<32x32xf32, #tpu.memory_space<vmem>>, %arg7: memref<1x32xf32, #tpu.memory_space<vmem>>, %arg8: memref<1x32xf32, #tpu.memory_space<vmem>>, %arg9: memref<1x1xf32, #tpu.memory_space<vmem>>, %arg10: memref<8x1xf32, #tpu.memory_space<vmem>>) attributes {dimension_semantics = [#tpu.dimension_semantics<parallel>], iteration_bounds = array<i64: 1>, scalar_prefetch = 0 : i64, scratch_operands = 0 : i64, tpu.core_type = #tpu.core_type<tc>, window_params = [{transform_indices = @transform_0, window_bounds = array<i64: 8, 24>}, {transform_indices = @transform_1, window_bounds = array<i64: 8, 8>}, {pipeline_mode = #tpu.pipeline_mode<synchronous>, transform_indices = @transform_2, window_bounds = array<i64: 24, 32>}, {pipeline_mode = #tpu.pipeline_mode<synchronous>, transform_indices = @transform_3, window_bounds = array<i64: 8, 32>}, {pipeline_mode = #tpu.pipeline_mode<synchronous>, transform_indices = @transform_4, window_bounds = array<i64: 1, 32>}, {pipeline_mode = #tpu.pipeline_mode<synchronous>, transform_indices = @transform_5, window_bounds = array<i64: 32, 32>}, {pipeline_mode = #tpu.pipeline_mode<synchronous>, transform_indices = @transform_6, window_bounds = array<i64: 1, 32>}, {pipeline_mode = #tpu.pipeline_mode<synchronous>, transform_indices = @transform_7, window_bounds = array<i64: 1, 32>}, {pipeline_mode = #tpu.pipeline_mode<synchronous>, transform_indices = @transform_8, window_bounds = array<i64: 1, 1>}, {transform_indices = @transform_9, window_bounds = array<i64: 8, 1>}]} {
    %c0 = arith.constant 0 : index
    %c0_0 = arith.constant 0 : index
    %0 = vector.load %arg1[%c0, %c0_0] : memref<8x24xf32, #tpu.memory_space<vmem>>, vector<8x24xf32>
    %c0_1 = arith.constant 0 : index
    %c0_2 = arith.constant 0 : index
    %1 = vector.load %arg3[%c0_1, %c0_2] : memref<24x32xf32, #tpu.memory_space<vmem>>, vector<24x32xf32>
    %cst = arith.constant dense<0.000000e+00> : vector<8x32xf32>
    %2 = tpu.matmul %0, %1, %cst {dimension_numbers = #tpu.dot_dimension_numbers<[1], [0], [0], [1], [0, 0, 1, 1], [], []>} : vector<8x24xf32>, vector<24x32xf32>, vector<8x32xf32> -> vector<8x32xf32>
    %c0_3 = arith.constant 0 : index
    %c0_4 = arith.constant 0 : index
    %3 = vector.load %arg2[%c0_3, %c0_4] : memref<8x8xf32, #tpu.memory_space<vmem>>, vector<8x8xf32>
    %c0_5 = arith.constant 0 : index
    %c0_6 = arith.constant 0 : index
    %4 = vector.load %arg4[%c0_5, %c0_6] : memref<8x32xf32, #tpu.memory_space<vmem>>, vector<8x32xf32>
    %cst_7 = arith.constant dense<0.000000e+00> : vector<8x32xf32>
    %5 = tpu.matmul %3, %4, %cst_7 {dimension_numbers = #tpu.dot_dimension_numbers<[1], [0], [0], [1], [0, 0, 1, 1], [], []>} : vector<8x8xf32>, vector<8x32xf32>, vector<8x32xf32> -> vector<8x32xf32>
    %6 = arith.addf %2, %5 : vector<8x32xf32>
    %c0_8 = arith.constant 0 : index
    %c0_9 = arith.constant 0 : index
    %7 = vector.load %arg5[%c0_8, %c0_9] : memref<1x32xf32, #tpu.memory_space<vmem>>, vector<1x32xf32>
    %8 = vector.broadcast %7 : vector<1x32xf32> to vector<8x32xf32>
    %9 = arith.addf %6, %8 : vector<8x32xf32>
    %cst_10 = arith.constant 0.000000e+00 : f32
    %10 = vector.broadcast %cst_10 : f32 to vector<8x32xf32>
    %11 = arith.maximumf %9, %10 : vector<8x32xf32>
    %c0_11 = arith.constant 0 : index
    %c0_12 = arith.constant 0 : index
    %12 = vector.load %arg6[%c0_11, %c0_12] : memref<32x32xf32, #tpu.memory_space<vmem>>, vector<32x32xf32>
    %cst_13 = arith.constant dense<0.000000e+00> : vector<8x32xf32>
    %13 = tpu.matmul %11, %12, %cst_13 {dimension_numbers = #tpu.dot_dimension_numbers<[1], [0], [0], [1], [0, 0, 1, 1], [], []>} : vector<8x32xf32>, vector<32x32xf32>, vector<8x32xf32> -> vector<8x32xf32>
    %c0_14 = arith.constant 0 : index
    %c0_15 = arith.constant 0 : index
    %14 = vector.load %arg7[%c0_14, %c0_15] : memref<1x32xf32, #tpu.memory_space<vmem>>, vector<1x32xf32>
    %15 = vector.broadcast %14 : vector<1x32xf32> to vector<8x32xf32>
    %16 = arith.addf %13, %15 : vector<8x32xf32>
    %cst_16 = arith.constant 0.000000e+00 : f32
    %17 = vector.broadcast %cst_16 : f32 to vector<8x32xf32>
    %18 = arith.maximumf %16, %17 : vector<8x32xf32>
    %c0_17 = arith.constant 0 : index
    %c0_18 = arith.constant 0 : index
    %19 = vector.load %arg8[%c0_17, %c0_18] : memref<1x32xf32, #tpu.memory_space<vmem>>, vector<1x32xf32>
    %20 = vector.broadcast %19 : vector<1x32xf32> to vector<8x32xf32>
    %21 = arith.mulf %18, %20 : vector<8x32xf32>
    %cst_19 = arith.constant dense<0.000000e+00> : vector<8xf32>
    %22 = vector.multi_reduction <add>, %21, %cst_19 [1] : vector<8x32xf32> to vector<8xf32>
    %23 = vector.shape_cast %22 : vector<8xf32> to vector<8x1xf32>
    %c0_20 = arith.constant 0 : index
    %c0_21 = arith.constant 0 : index
    %24 = vector.load %arg9[%c0_20, %c0_21] : memref<1x1xf32, #tpu.memory_space<vmem>>, vector<1x1xf32>
    %25 = vector.broadcast %24 : vector<1x1xf32> to vector<8x1xf32>
    %26 = arith.addf %23, %25 : vector<8x1xf32>
    %c0_22 = arith.constant 0 : index
    %c0_23 = arith.constant 0 : index
    %27 = vector.load %arg10[%c0_22, %c0_23] : memref<8x1xf32, #tpu.memory_space<vmem>>, vector<8x1xf32>
    tpu.vector_store %arg10[%c0_22, %c0_23], %26 {strides = array<i32>} : memref<8x1xf32, #tpu.memory_space<vmem>>, vector<8x1xf32>,
    return
  }
  func.func @transform_0(%arg0: i32) -> (i32, i32) {
    %c0_i32 = arith.constant 0 : i32
    %c0_i32_0 = arith.constant 0 : i32
    return %arg0, %c0_i32 : i32, i32
  }
  func.func @transform_1(%arg0: i32) -> (i32, i32) {
    %c0_i32 = arith.constant 0 : i32
    %c0_i32_0 = arith.constant 0 : i32
    return %arg0, %c0_i32 : i32, i32
  }
  func.func @transform_2(%arg0: i32) -> (i32, i32) {
    %c0_i32 = arith.constant 0 : i32
    %c0_i32_0 = arith.constant 0 : i32
    %c0_i32_1 = arith.constant 0 : i32
    return %c0_i32, %c0_i32_0 : i32, i32
  }
  func.func @transform_3(%arg0: i32) -> (i32, i32) {
    %c0_i32 = arith.constant 0 : i32
    %c0_i32_0 = arith.constant 0 : i32
    %c0_i32_1 = arith.constant 0 : i32
    return %c0_i32, %c0_i32_0 : i32, i32
  }
  func.func @transform_4(%arg0: i32) -> (i32, i32) {
    %c0_i32 = arith.constant 0 : i32
    %c0_i32_0 = arith.constant 0 : i32
    %c0_i32_1 = arith.constant 0 : i32
    return %c0_i32, %c0_i32_0 : i32, i32
  }
  func.func @transform_5(%arg0: i32) -> (i32, i32) {
    %c0_i32 = arith.constant 0 : i32
    %c0_i32_0 = arith.constant 0 : i32
    %c0_i32_1 = arith.constant 0 : i32
    return %c0_i32, %c0_i32_0 : i32, i32
  }
  func.func @transform_6(%arg0: i32) -> (i32, i32) {
    %c0_i32 = arith.constant 0 : i32
    %c0_i32_0 = arith.constant 0 : i32
    %c0_i32_1 = arith.constant 0 : i32
    return %c0_i32, %c0_i32_0 : i32, i32
  }
  func.func @transform_7(%arg0: i32) -> (i32, i32) {
    %c0_i32 = arith.constant 0 : i32
    %c0_i32_0 = arith.constant 0 : i32
    %c0_i32_1 = arith.constant 0 : i32
    return %c0_i32, %c0_i32_0 : i32, i32
  }
  func.func @transform_8(%arg0: i32) -> (i32, i32) {
    %c0_i32 = arith.constant 0 : i32
    %c0_i32_0 = arith.constant 0 : i32
    %c0_i32_1 = arith.constant 0 : i32
    return %c0_i32, %c0_i32_0 : i32, i32
  }
  func.func @transform_9(%arg0: i32) -> (i32, i32) {
    %c0_i32 = arith.constant 0 : i32
    %c0_i32_0 = arith.constant 0 : i32
    return %arg0, %c0_i32 : i32, i32
  }
}

</mosaic_0001>

<llo_original>
// kernel: tpu_custom_call.1
$region0: #{tpu_custom_call.1}
  #allocation0 [shape = 'u32[]', space=smem, size = 0x4, offset = 0x4, fixed_abs, tag = 'smem constant byte address 0x4 - core index']
  #allocation1 [shape = 'u32[144,128]{1,0:T(1,128)}', space=vmem, size = 0x12000, scoped, tag = 'internal scratch']
  #allocation2 [shape = 'f32[1,1]{1,0:T(1,128)S(1)}', space=vmem, size = 0x200, scoped, tag = 'scoped memory for tpu_custom_call.1']
  %s0 = inlined_call_operand.hbm [shape: f32[8,24], index: 0, kind: input, shape index: {}]
  %s1 = inlined_call_operand.hbm [shape: f32[8,8], index: 1, kind: input, shape index: {}]
  %s2 = inlined_call_operand.hbm [shape: f32[24,32], index: 2, kind: input, shape index: {}]
  %s3 = inlined_call_operand.hbm [shape: f32[8,32], index: 3, kind: input, shape index: {}]
  %s4 = inlined_call_operand.vmem [shape: f32[1,32], index: 4, kind: input, shape index: {}]
  %s5 = inlined_call_operand.hbm [shape: f32[32,32], index: 5, kind: input, shape index: {}]
  %s6 = inlined_call_operand.vmem [shape: f32[1,32], index: 6, kind: input, shape index: {}]
  %s7 = inlined_call_operand.vmem [shape: f32[1,32], index: 7, kind: input, shape index: {}]
  %s8 = inlined_call_operand.<no memory space> [shape: f32[1,1], index: 8, kind: input, shape index: {}]
  %s9 = inlined_call_operand.vmem [shape: f32[8,1], index: 9, kind: output, shape index: {}]
  %s10 = sld [smem:[#allocation0]]
  $region66: #{tpu_custom_call.1} parent=0
    _
  %s12 = ssub.s32 1, %s10
  %s13 = scalar_select 0, %s12, %s10
  %v14 = vstv %s8
  %15 = vst [vmem:[#allocation2] sm:$0x1] %v14
  $region1: #{tpu_custom_call.1} parent=0
    #allocation3 [shape = 'u8[4096]{0}', space=vmem, size = 0x1000, scoped, tag = 'input window, operand 0, single buffered']
    #allocation4 [shape = 's32[1]{0}', space=sflag, size = 0x4, scoped, tag = 'scoped memory for tpu_custom_call.1']
    #allocation5 [shape = 'u8[4096]{0}', space=vmem, size = 0x1000, scoped, tag = 'input window, operand 1, single buffered']
    #allocation6 [shape = 's32[1]{0}', space=sflag, size = 0x4, scoped, tag = 'scoped memory for tpu_custom_call.1']
    #allocation7 [shape = 'u8[12288]{0}', space=vmem, size = 0x3000, scoped, tag = 'input window, operand 2, single buffered']
    #allocation8 [shape = 'u8[4096]{0}', space=vmem, size = 0x1000, scoped, tag = 'input window, operand 3, single buffered']
    #allocation9 [shape = 's32[1]{0}', space=sflag, size = 0x4, scoped, tag = 'scoped memory for tpu_custom_call.1']
    #allocation10 [shape = 'u8[16384]{0}', space=vmem, size = 0x4000, scoped, tag = 'input window, operand 5, single buffered']
    %16 = vsyncpa [#allocation4], 0
    %17 = vsyncpa [#allocation6], 0
    %18 = vsyncpa [#allocation9], 0
    // Predicated region
    $region2: #{tpu_custom_call.1} parent=1 // pred_check
      _
    $region3: #{tpu_custom_call.1} parent=1 // pred_check_branch
      %20 = sbr.rel (0) target = $region5
    $region4: #{tpu_custom_call.1} parent=1 // pred_region
      %s22 = ssub.s32 128, 128
      %23 = vsyncadd [#allocation4], %s22
      %s25 = sshll.u32 [#allocation3], 4
      %s26 = int_to_ptr.vmem [resolvable:$true] %s25
      %28 = dma.hbm_to_vmem [thread:$0]  %s0, 128, %s26, [#allocation4]
    $region5: #{tpu_custom_call.1} parent=1 // pred_fallthru
      _
    // Predicated region
    $region6: #{tpu_custom_call.1} parent=1 // pred_check
      _
    $region7: #{tpu_custom_call.1} parent=1 // pred_check_branch
      %30 = sbr.rel (0) target = $region9
    $region8: #{tpu_custom_call.1} parent=1 // pred_region
      %s32 = ssub.s32 128, 128
      %33 = vsyncadd [#allocation6], %s32
      %s35 = sshll.u32 [#allocation5], 4
      %s36 = int_to_ptr.vmem [resolvable:$true] %s35
      %38 = dma.hbm_to_vmem [thread:$0]  %s1, 128, %s36, [#allocation6]
    $region9: #{tpu_custom_call.1} parent=1 // pred_fallthru
      _
    // Predicated region
    $region10: #{tpu_custom_call.1} parent=1 // pred_check
      _
    $region11: #{tpu_custom_call.1} parent=1 // pred_check_branch
      %40 = sbr.rel (0) target = $region13
    $region12: #{tpu_custom_call.1} parent=1 // pred_region
      %s42 = ssub.s32 384, 384
      %43 = vsyncadd [#allocation6], %s42
      %s44 = sshll.u32 [#allocation7], 4
      %s45 = int_to_ptr.vmem [resolvable:$true] %s44
      %50 = dma.hbm_to_vmem [thread:$0]  %s2, 384, %s45, [#allocation6], 128, 128, 8
    $region13: #{tpu_custom_call.1} parent=1 // pred_fallthru
      _
    // Predicated region
    $region14: #{tpu_custom_call.1} parent=1 // pred_check
      _
    $region15: #{tpu_custom_call.1} parent=1 // pred_check_branch
      %52 = sbr.rel (0) target = $region17
    $region16: #{tpu_custom_call.1} parent=1 // pred_region
      %s54 = ssub.s32 128, 128
      %55 = vsyncadd [#allocation9], %s54
      %s57 = sshll.u32 [#allocation8], 4
      %s58 = int_to_ptr.vmem [resolvable:$true] %s57
      %60 = dma.hbm_to_vmem [thread:$0]  %s3, 128, %s58, [#allocation9]
    $region17: #{tpu_custom_call.1} parent=1 // pred_fallthru
      _
    // Predicated region
    $region18: #{tpu_custom_call.1} parent=1 // pred_check
      _
    $region19: #{tpu_custom_call.1} parent=1 // pred_check_branch
      %62 = sbr.rel (0) target = $region21
    $region20: #{tpu_custom_call.1} parent=1 // pred_region
      _
    $region21: #{tpu_custom_call.1} parent=1 // pred_fallthru
      _
    // Predicated region
    $region22: #{tpu_custom_call.1} parent=1 // pred_check
      _
    $region23: #{tpu_custom_call.1} parent=1 // pred_check_branch
      %64 = sbr.rel (0) target = $region25
    $region24: #{tpu_custom_call.1} parent=1 // pred_region
      %s66 = ssub.s32 512, 512
      %67 = vsyncadd [#allocation9], %s66
      %s68 = sshll.u32 [#allocation10], 4
      %s69 = int_to_ptr.vmem [resolvable:$true] %s68
      %74 = dma.hbm_to_vmem [thread:$0]  %s5, 512, %s69, [#allocation9], 128, 128, 8
    $region25: #{tpu_custom_call.1} parent=1 // pred_fallthru
      _
    // Predicated region
    $region26: #{tpu_custom_call.1} parent=1 // pred_check
      _
    $region27: #{tpu_custom_call.1} parent=1 // pred_check_branch
      %76 = sbr.rel (0) target = $region29
    $region28: #{tpu_custom_call.1} parent=1 // pred_region
      _
    $region29: #{tpu_custom_call.1} parent=1 // pred_fallthru
      _
    // Predicated region
    $region30: #{tpu_custom_call.1} parent=1 // pred_check
      _
    $region31: #{tpu_custom_call.1} parent=1 // pred_check_branch
      %78 = sbr.rel (0) target = $region33
    $region32: #{tpu_custom_call.1} parent=1 // pred_region
      _
    $region33: #{tpu_custom_call.1} parent=1 // pred_fallthru
      _
    // Predicated region
    $region34: #{tpu_custom_call.1} parent=1 // pred_check
      _
    $region35: #{tpu_custom_call.1} parent=1 // pred_check_branch
      %80 = sbr.rel (0) target = $region37
    $region36: #{tpu_custom_call.1} parent=1 // pred_region
      _
    $region37: #{tpu_custom_call.1} parent=1 // pred_fallthru
      _
    // Predicated region
    $region38: #{tpu_custom_call.1} parent=1 // pred_check
      _
    $region39: #{tpu_custom_call.1} parent=1 // pred_check_branch
      %82 = sbr.rel (0) target = $region41
    $region40: #{tpu_custom_call.1} parent=1 // pred_region
      %83 = dma.done [#allocation4], 128
    $region41: #{tpu_custom_call.1} parent=1 // pred_fallthru
      _
    // Predicated region
    $region42: #{tpu_custom_call.1} parent=1 // pred_check
      _
    $region43: #{tpu_custom_call.1} parent=1 // pred_check_branch
      %85 = sbr.rel (0) target = $region45
    $region44: #{tpu_custom_call.1} parent=1 // pred_region
      %86 = dma.done [#allocation6], 128
    $region45: #{tpu_custom_call.1} parent=1 // pred_fallthru
      _
    // Predicated region
    $region46: #{tpu_custom_call.1} parent=1 // pred_check
      _
    $region47: #{tpu_custom_call.1} parent=1 // pred_check_branch
      %88 = sbr.rel (0) target = $region49
    $region48: #{tpu_custom_call.1} parent=1 // pred_region
      %89 = dma.done [#allocation6], 384
    $region49: #{tpu_custom_call.1} parent=1 // pred_fallthru
      _
    // Predicated region
    $region50: #{tpu_custom_call.1} parent=1 // pred_check
      _
    $region51: #{tpu_custom_call.1} parent=1 // pred_check_branch
      %91 = sbr.rel (0) target = $region53
    $region52: #{tpu_custom_call.1} parent=1 // pred_region
      %92 = dma.done [#allocation9], 128
    $region53: #{tpu_custom_call.1} parent=1 // pred_fallthru
      _
    // Predicated region
    $region54: #{tpu_custom_call.1} parent=1 // pred_check
      _
    $region55: #{tpu_custom_call.1} parent=1 // pred_check_branch
      %94 = sbr.rel (0) target = $region57
    $region56: #{tpu_custom_call.1} parent=1 // pred_region
      %95 = dma.done [#allocation9], 512
    $region57: #{tpu_custom_call.1} parent=1 // pred_fallthru
      _
    %v96 = vld [vmem:[#allocation3] sm:$0xff]
    %v97 = vld [vmem:[#allocation7] sm:$0xff]
    %v98 = vld [vmem:[#allocation7 + $0x8] sm:$0xff]
    %v99 = vld [vmem:[#allocation7 + $0x10] sm:$0xff]
    %v100 = vld [vmem:[#allocation5] sm:$0xff]
    %v101 = vld [vmem:[#allocation8] sm:$0xff]
    %vm102 = vcmask 64512
    %v104 = vsel %vm102, %v100, 0
    %106 = vmatprep.subr.mxu0 0.0
    %107 = vmatpush1.msra.mxu0 0.0
    %108 = vmatprep.subr.mxu0 0.0
    %109 = vmatpush1.msra.mxu0 0.0
    %110 = vmatprep.subr.mxu0 0.0
    %111 = vmatpush1.msra.mxu0 0.0
    %112 = vmatprep.subr.mxu0 0.0
    %113 = vmatpush1.msra.mxu0 0.0
    %114 = vmatprep.subr.mxu0 0.0
    %115 = vmatpush1.msra.mxu0 0.0
    %116 = vmatprep.subr.mxu0 0.0
    %117 = vmatpush1.msra.mxu0 0.0
    %118 = vmatprep.subr.mxu0 0.0
    %119 = vmatpush1.msra.mxu0 0.0
    %120 = vmatprep.subr.mxu0 0.0
    %121 = vmatpush1.msra.mxu0 0.0
    %122 = vmatprep.subr.mxu0 0.0
    %123 = vmatpush1.msra.mxu0 0.0
    %124 = vmatprep.subr.mxu0 0.0
    %125 = vmatpush1.msra.mxu0 0.0
    %126 = vmatprep.subr.mxu0 0.0
    %127 = vmatpush1.msra.mxu0 0.0
    %128 = vmatprep.subr.mxu0 0.0
    %129 = vmatpush1.msra.mxu0 0.0
    %130 = vmatprep.subr.mxu0 0.0
    %131 = vmatpush1.msra.mxu0 0.0
    %132 = vmatprep.subr.mxu0 0.0
    %133 = vmatpush1.msra.mxu0 0.0
    %134 = vmatprep.subr.mxu0 0.0
    %135 = vmatpush1.msra.mxu0 0.0
    %136 = vmatprep.subr.mxu0 0.0
    %137 = vmatpush1.msra.mxu0 %v101
    %138 = vmatprep.subr.mxu0 0.0
    %139 = vmatpush2.msra.mxu0 0.0
    %140 = vmatprep.subr.mxu0 0.0
    %141 = vmatpush2.msra.mxu0 0.0
    %142 = vmatprep.subr.mxu0 0.0
    %143 = vmatpush2.msra.mxu0 0.0
    %144 = vmatprep.subr.mxu0 0.0
    %145 = vmatpush2.msra.mxu0 0.0
    %146 = vmatprep.subr.mxu0 0.0
    %147 = vmatpush2.msra.mxu0 0.0
    %148 = vmatprep.subr.mxu0 0.0
    %149 = vmatpush2.msra.mxu0 0.0
    %150 = vmatprep.subr.mxu0 0.0
    %151 = vmatpush2.msra.mxu0 0.0
    %152 = vmatprep.subr.mxu0 0.0
    %153 = vmatpush2.msra.mxu0 0.0
    %154 = vmatprep.subr.mxu0 0.0
    %155 = vmatpush2.msra.mxu0 0.0
    %156 = vmatprep.subr.mxu0 0.0
    %157 = vmatpush2.msra.mxu0 0.0
    %158 = vmatprep.subr.mxu0 0.0
    %159 = vmatpush2.msra.mxu0 0.0
    %160 = vmatprep.subr.mxu0 0.0
    %161 = vmatpush2.msra.mxu0 0.0
    %162 = vmatprep.subr.mxu0 0.0
    %163 = vmatpush2.msra.mxu0 0.0
    %164 = vmatprep.subr.mxu0 0.0
    %165 = vmatpush2.msra.mxu0 0.0
    %166 = vmatprep.subr.mxu0 0.0
    %167 = vmatpush2.msra.mxu0 0.0
    %168 = vmatprep.subr.mxu0 0.0
    %169 = vmatpush2.msra.mxu0 0.0
    %170 = vmatprep.mubr.f32.mxu0 0.0
    %171 = vmatmul.mubr.f32.gmra.mxu0 %v104
    %v172 = vpop.f32.mrf.mxu0
    %v173 = vadd.f32 0.0, %v172
    %v174 = vpop.f32.mrf.mxu0
    %175 = vdwg.mxu0
    %vm176 = vcmask 195584
    %v178 = vsel %vm176, %v96, 0
    %180 = vmatprep.subr.mxu0 0.0
    %181 = vmatpush1.msra.mxu0 0.0
    %182 = vmatprep.subr.mxu0 0.0
    %183 = vmatpush1.msra.mxu0 0.0
    %184 = vmatprep.subr.mxu0 0.0
    %185 = vmatpush1.msra.mxu0 0.0
    %186 = vmatprep.subr.mxu0 0.0
    %187 = vmatpush1.msra.mxu0 0.0
    %188 = vmatprep.subr.mxu0 0.0
    %189 = vmatpush1.msra.mxu0 0.0
    %190 = vmatprep.subr.mxu0 0.0
    %191 = vmatpush1.msra.mxu0 0.0
    %192 = vmatprep.subr.mxu0 0.0
    %193 = vmatpush1.msra.mxu0 0.0
    %194 = vmatprep.subr.mxu0 0.0
    %195 = vmatpush1.msra.mxu0 0.0
    %196 = vmatprep.subr.mxu0 0.0
    %197 = vmatpush1.msra.mxu0 0.0
    %198 = vmatprep.subr.mxu0 0.0
    %199 = vmatpush1.msra.mxu0 0.0
    %200 = vmatprep.subr.mxu0 0.0
    %201 = vmatpush1.msra.mxu0 0.0
    %202 = vmatprep.subr.mxu0 0.0
    %203 = vmatpush1.msra.mxu0 0.0
    %204 = vmatprep.subr.mxu0 0.0
    %205 = vmatpush1.msra.mxu0 0.0
    %206 = vmatprep.subr.mxu0 0.0
    %207 = vmatpush1.msra.mxu0 %v99
    %208 = vmatprep.subr.mxu0 0.0
    %209 = vmatpush1.msra.mxu0 %v98
    %210 = vmatprep.subr.mxu0 0.0
    %211 = vmatpush1.msra.mxu0 %v97
    %212 = vmatprep.subr.mxu0 0.0
    %213 = vmatpush2.msra.mxu0 0.0
    %214 = vmatprep.subr.mxu0 0.0
    %215 = vmatpush2.msra.mxu0 0.0
    %216 = vmatprep.subr.mxu0 0.0
    %217 = vmatpush2.msra.mxu0 0.0
    %218 = vmatprep.subr.mxu0 0.0
    %219 = vmatpush2.msra.mxu0 0.0
    %220 = vmatprep.subr.mxu0 0.0
    %221 = vmatpush2.msra.mxu0 0.0
    %222 = vmatprep.subr.mxu0 0.0
    %223 = vmatpush2.msra.mxu0 0.0
    %224 = vmatprep.subr.mxu0 0.0
    %225 = vmatpush2.msra.mxu0 0.0
    %226 = vmatprep.subr.mxu0 0.0
    %227 = vmatpush2.msra.mxu0 0.0
    %228 = vmatprep.subr.mxu0 0.0
    %229 = vmatpush2.msra.mxu0 0.0
    %230 = vmatprep.subr.mxu0 0.0
    %231 = vmatpush2.msra.mxu0 0.0
    %232 = vmatprep.subr.mxu0 0.0
    %233 = vmatpush2.msra.mxu0 0.0
    %234 = vmatprep.subr.mxu0 0.0
    %235 = vmatpush2.msra.mxu0 0.0
    %236 = vmatprep.subr.mxu0 0.0
    %237 = vmatpush2.msra.mxu0 0.0
    %238 = vmatprep.subr.mxu0 0.0
    %239 = vmatpush2.msra.mxu0 0.0
    %240 = vmatprep.subr.mxu0 0.0
    %241 = vmatpush2.msra.mxu0 0.0
    %242 = vmatprep.subr.mxu0 0.0
    %243 = vmatpush2.msra.mxu0 0.0
    %244 = vmatprep.mubr.f32.mxu0 0.0
    %245 = vmatmul.mubr.f32.gmra.mxu0 %v178
    %v246 = vpop.f32.mrf.mxu0
    %v247 = vadd.f32 %v173, %v246
    %v248 = vpop.f32.mrf.mxu0
    %249 = vdwg.mxu0
    %v250 = vld [vmem:[%s4] sm:$0x1]
    %v252 = vlaneseq
    %v253 = vshrl.u32 %v252, 7
    %v254 = vsub.s32 0, %v253
    %v255 = vrot.slane %v250, %v254
    %v257 = vadd.f32 %v247, %v255
    %v258 = vmax.f32 %v257, 0.0
    %v259 = vld [vmem:[#allocation10] sm:$0xff]
    %v260 = vld [vmem:[#allocation10 + $0x8] sm:$0xff]
    %v261 = vld [vmem:[#allocation10 + $0x10] sm:$0xff]
    %v262 = vld [vmem:[#allocation10 + $0x18] sm:$0xff]
    %v263 = vld [vmem:[%s6] sm:$0x1]
    %v265 = vlaneseq
    %v266 = vshrl.u32 %v265, 7
    %v267 = vsub.s32 0, %v266
    %v268 = vrot.slane %v263, %v267
    %vm270 = vcmask 261120
    %v272 = vsel %vm270, %v258, 0
    %274 = vmatprep.subr.mxu0 0.0
    %275 = vmatpush1.msra.mxu0 0.0
    %276 = vmatprep.subr.mxu0 0.0
    %277 = vmatpush1.msra.mxu0 0.0
    %278 = vmatprep.subr.mxu0 0.0
    %279 = vmatpush1.msra.mxu0 0.0
    %280 = vmatprep.subr.mxu0 0.0
    %281 = vmatpush1.msra.mxu0 0.0
    %282 = vmatprep.subr.mxu0 0.0
    %283 = vmatpush1.msra.mxu0 0.0
    %284 = vmatprep.subr.mxu0 0.0
    %285 = vmatpush1.msra.mxu0 0.0
    %286 = vmatprep.subr.mxu0 0.0
    %287 = vmatpush1.msra.mxu0 0.0
    %288 = vmatprep.subr.mxu0 0.0
    %289 = vmatpush1.msra.mxu0 0.0
    %290 = vmatprep.subr.mxu0 0.0
    %291 = vmatpush1.msra.mxu0 0.0
    %292 = vmatprep.subr.mxu0 0.0
    %293 = vmatpush1.msra.mxu0 0.0
    %294 = vmatprep.subr.mxu0 0.0
    %295 = vmatpush1.msra.mxu0 0.0
    %296 = vmatprep.subr.mxu0 0.0
    %297 = vmatpush1.msra.mxu0 0.0
    %298 = vmatprep.subr.mxu0 0.0
    %299 = vmatpush1.msra.mxu0 %v262
    %300 = vmatprep.subr.mxu0 0.0
    %301 = vmatpush1.msra.mxu0 %v261
    %302 = vmatprep.subr.mxu0 0.0
    %303 = vmatpush1.msra.mxu0 %v260
    %304 = vmatprep.subr.mxu0 0.0
    %305 = vmatpush1.msra.mxu0 %v259
    %306 = vmatprep.subr.mxu0 0.0
    %307 = vmatpush2.msra.mxu0 0.0
    %308 = vmatprep.subr.mxu0 0.0
    %309 = vmatpush2.msra.mxu0 0.0
    %310 = vmatprep.subr.mxu0 0.0
    %311 = vmatpush2.msra.mxu0 0.0
    %312 = vmatprep.subr.mxu0 0.0
    %313 = vmatpush2.msra.mxu0 0.0
    %314 = vmatprep.subr.mxu0 0.0
    %315 = vmatpush2.msra.mxu0 0.0
    %316 = vmatprep.subr.mxu0 0.0
    %317 = vmatpush2.msra.mxu0 0.0
    %318 = vmatprep.subr.mxu0 0.0
    %319 = vmatpush2.msra.mxu0 0.0
    %320 = vmatprep.subr.mxu0 0.0
    %321 = vmatpush2.msra.mxu0 0.0
    %322 = vmatprep.subr.mxu0 0.0
    %323 = vmatpush2.msra.mxu0 0.0
    %324 = vmatprep.subr.mxu0 0.0
    %325 = vmatpush2.msra.mxu0 0.0
    %326 = vmatprep.subr.mxu0 0.0
    %327 = vmatpush2.msra.mxu0 0.0
    %328 = vmatprep.subr.mxu0 0.0
    %329 = vmatpush2.msra.mxu0 0.0
    %330 = vmatprep.subr.mxu0 0.0
    %331 = vmatpush2.msra.mxu0 0.0
    %332 = vmatprep.subr.mxu0 0.0
    %333 = vmatpush2.msra.mxu0 0.0
    %334 = vmatprep.subr.mxu0 0.0
    %335 = vmatpush2.msra.mxu0 0.0
    %336 = vmatprep.subr.mxu0 0.0
    %337 = vmatpush2.msra.mxu0 0.0
    %338 = vmatprep.mubr.f32.mxu0 0.0
    %339 = vmatmul.mubr.f32.gmra.mxu0 %v272
    %v340 = vpop.f32.mrf.mxu0
    %v341 = vadd.f32 %v268, %v340
    %v342 = vpop.f32.mrf.mxu0
    %343 = vdwg.mxu0
    %v344 = vmax.f32 %v341, 0.0
    %v345 = vld [vmem:[%s7] sm:$0x1]
    %v347 = vlaneseq
    %v348 = vshrl.u32 %v347, 7
    %v349 = vsub.s32 0, %v348
    %v350 = vrot.slane %v345, %v349
    %v352 = vmul.f32 %v344, %v350
    %v353 = vsel %vm270, %v352, 0.0
    %354 = vadd.xlane.f32.xlu0 %v353
    %v355 = vpop.xlane.xlu0 %354
    %v356 = vld [vmem:[#allocation2] sm:$0x1]
    %v358 = vlaneseq
    %v359 = vshrl.u32 %v358, 7
    %v360 = vsub.s32 0, %v359
    %v361 = vrot.slane %v356, %v360
    %v363 = vadd.f32 %v355, %v361
    %vm364 = vcmask 7168
    %365 = vst.msk [vmem:[%s9] sm:$0xff] %vm364, %v363
    // Predicated region
    $region58: #{tpu_custom_call.1} parent=1 // pred_check
      _
    $region59: #{tpu_custom_call.1} parent=1 // pred_check_branch
      %367 = sbr.rel (0) target = $region61
    $region60: #{tpu_custom_call.1} parent=1 // pred_region
      _
    $region61: #{tpu_custom_call.1} parent=1 // pred_fallthru
      _
    // Predicated region
    $region62: #{tpu_custom_call.1} parent=1 // pred_check
      _
    $region63: #{tpu_custom_call.1} parent=1 // pred_check_branch
      %369 = sbr.rel (0) target = $region65
    $region64: #{tpu_custom_call.1} parent=1 // pred_region
      _
    $region65: #{tpu_custom_call.1} parent=1 // pred_fallthru
      _
    %370 = vsyncpa [#allocation4], 1
    %371 = vsyncpa [#allocation6], 1
    %372 = vsyncpa [#allocation9], 1

</llo_original>
